<compile_context>
chip_gen: v6e
topology: v6e:2x2x1
jax: 0.10.0
libtpu: 0.0.40
codegen_flags: <defaults>
</compile_context>

<pallas_src>
import functools

import jax
import jax.numpy as jnp
from jax import lax
from jax.experimental import pallas as pl
from jax.experimental.pallas import tpu as pltpu


def _mha_fused_kernel(x_ref, wq_ref, wk_ref, wv_ref, o_ref, *, num_heads, d_out):
    """One grid step = one batch element, ALL heads fused.

    x_ref : (1, n, d_in)        one batch element
    w*_ref: (d_in, H*d_out)     all heads' projection weights, lane-stacked
    o_ref : (1, n, H*d_out)     lane-dense output slab in the final layout
    """
    x = x_ref[0]                                   # (n, d_in)
    n = x.shape[0]

    scale = 1.0 / float(d_out) ** 0.5

    # Fused projections for all heads: one lane-dense MXU matmul each.
    # Fold the softmax scale into q (cheaper than scaling the (n, n) scores).
    q = jnp.dot(x, wq_ref[...], preferred_element_type=jnp.float32) * scale
    k = jnp.dot(x, wk_ref[...], preferred_element_type=jnp.float32)
    v = jnp.dot(x, wv_ref[...], preferred_element_type=jnp.float32)

    # Mask built once, shared by every head (hoisted out of the head loop).
    # Literal reproduction of masked_fill(tril(ones).bool(), -inf): the lower
    # triangle INCLUDING the diagonal is filled with -inf (last row -> NaN
    # after softmax, exactly like the PyTorch reference).
    row = lax.broadcasted_iota(jnp.int32, (n, n), 0)
    col = lax.broadcasted_iota(jnp.int32, (n, n), 1)
    tril = row >= col

    head_ctx = []
    for h in range(num_heads):                     # static, unrolled head loop
        lo = h * d_out
        qh = q[:, lo:lo + d_out]                   # (n, d_out)
        kh = k[:, lo:lo + d_out]
        vh = v[:, lo:lo + d_out]

        # attention_scores = queries @ keys^T (scale already in q)
        s = jnp.einsum('qd,kd->qk', qh, kh, preferred_element_type=jnp.float32)
        s = jnp.where(tril, -jnp.inf, s)

        # softmax(dim=-1)
        m = jnp.max(s, axis=-1, keepdims=True)
        e = jnp.exp(s - m)
        denom = jnp.sum(e, axis=-1, keepdims=True)
        w = e * pl.reciprocal(denom, approx=False)

        # dropout: identity (see TODO above)

        # context_vector = attention_weights @ values
        head_ctx.append(
            jnp.dot(w, vh, preferred_element_type=jnp.float32))

    # torch.cat(..., dim=-1) done in-kernel -> single lane-dense store.
    o_ref[0] = jnp.concatenate(head_ctx, axis=-1).astype(o_ref.dtype)


@jax.jit
def inefficient_mha_forward(x, wq, wk, wv):
    """x: (B, n, d_in); wq/wk/wv: (H, d_in, d_out), already transposed so head h
    computes x @ wq[h] (== torch Linear with weight wq[h].T).
    Returns (B, n, H * d_out) == torch.cat([head(x) for head in heads], dim=-1)."""
    H, d_in, d_out = wq.shape
    B, n, _ = x.shape
    HD = H * d_out

    # One-time weight prep: stack per-head weights into lane-dense slabs
    # (d_in, H*d_out) so the kernel's projections are single wide matmuls.
    wq_s = jnp.transpose(wq, (1, 0, 2)).reshape(d_in, HD)
    wk_s = jnp.transpose(wk, (1, 0, 2)).reshape(d_in, HD)
    wv_s = jnp.transpose(wv, (1, 0, 2)).reshape(d_in, HD)

    kernel = functools.partial(_mha_fused_kernel, num_heads=H, d_out=d_out)

    return pl.pallas_call(
        kernel,
        out_shape=jax.ShapeDtypeStruct((B, n, HD), x.dtype),
        grid_spec=pltpu.PrefetchScalarGridSpec(
            num_scalar_prefetch=0,
            grid=(B,),
            in_specs=[
                pl.BlockSpec((1, n, d_in), lambda b: (b, 0, 0)),
                pl.BlockSpec((d_in, HD), lambda b: (0, 0)),
                pl.BlockSpec((d_in, HD), lambda b: (0, 0)),
                pl.BlockSpec((d_in, HD), lambda b: (0, 0)),
            ],
            out_specs=pl.BlockSpec((1, n, HD), lambda b: (b, 0, 0)),
        ),
        compiler_params=pltpu.CompilerParams(
            dimension_semantics=("parallel",)),
    )(x, wq_s, wk_s, wv_s)


def _reference_mha(x, wq, wk, wv):
    """Pure-JAX reference with identical (literal) masking semantics."""
    H, d_in, d_out = wq.shape
    B, n, _ = x.shape
    outs = []
    row = jnp.arange(n)[:, None]
    col = jnp.arange(n)[None, :]
    tril = row >= col
    for h in range(H):
        q = x @ wq[h]
        k = x @ wk[h]
        v = x @ wv[h]
        s = jnp.einsum('bqd,bkd->bqk', q, k)
        s = jnp.where(tril[None], -jnp.inf, s)
        s = s / (d_out ** 0.5)
        m = jnp.max(s, axis=-1, keepdims=True)
        e = jnp.exp(s - m)
        w = e / jnp.sum(e, axis=-1, keepdims=True)
        outs.append(jnp.einsum('bqk,bkd->bqd', w, v))
    return jnp.concatenate(outs, axis=-1)


def init_params(key, num_heads, d_in, d_out):
    """Deterministic nn.Linear-style init (uniform(-1/sqrt(d_in), 1/sqrt(d_in))),
    returned pre-transposed as (H, d_in, d_out)."""
    bound = 1.0 / (d_in ** 0.5)
    kq, kk, kv = jax.random.split(key, 3)
    shape = (num_heads, d_in, d_out)
    wq = jax.random.uniform(kq, shape, jnp.float32, -bound, bound)
    wk = jax.random.uniform(kk, shape, jnp.float32, -bound, bound)
    wv = jax.random.uniform(kv, shape, jnp.float32, -bound, bound)
    return wq, wk, wv


if __name__ == "__main__":
    # Small, module-consistent shapes.
    B, n, d_in, d_out, num_heads = 2, 8, 32, 16, 2
    context_length = n
    dropout = 0.0  # identity

    key = jax.random.PRNGKey(0)
    kx, kp = jax.random.split(key)
    x = jax.random.normal(kx, (B, n, d_in), dtype=jnp.float32)
    wq, wk, wv = init_params(kp, num_heads, d_in, d_out)

    out = inefficient_mha_forward(x, wq, wk, wv)
    out = jax.block_until_ready(out)
    assert out.shape == (B, n, num_heads * d_out)

    # Loose-tolerance parity check vs. pure-JAX reference (NaN rows from the
    # literal lower-triangle masking are expected and compared with equal_nan).
    ref = _reference_mha(x, wq, wk, wv)
    assert bool(jnp.allclose(out, ref, rtol=1e-3, atol=1e-3, equal_nan=True))

    print("KERNEL_OK")
</pallas_src>

<mosaic_0001>
module attributes {stable_mosaic.version = 11 : i64} {
  func.func @_mha_fused_kernel(%arg0: i32, %arg1: memref<1x8x32xf32, #tpu.memory_space<vmem>>, %arg2: memref<32x32xf32, #tpu.memory_space<vmem>>, %arg3: memref<32x32xf32, #tpu.memory_space<vmem>>, %arg4: memref<32x32xf32, #tpu.memory_space<vmem>>, %arg5: memref<1x8x32xf32, #tpu.memory_space<vmem>>) attributes {dimension_semantics = [#tpu.dimension_semantics<parallel>], iteration_bounds = array<i64: 2>, scalar_prefetch = 0 : i64, scratch_operands = 0 : i64, tpu.core_type = #tpu.core_type<tc>, window_params = [{transform_indices = @transform_0, window_bounds = array<i64: 1, 8, 32>}, {pipeline_mode = #tpu.pipeline_mode<synchronous>, transform_indices = @transform_1, window_bounds = array<i64: 32, 32>}, {pipeline_mode = #tpu.pipeline_mode<synchronous>, transform_indices = @transform_2, window_bounds = array<i64: 32, 32>}, {pipeline_mode = #tpu.pipeline_mode<synchronous>, transform_indices = @transform_3, window_bounds = array<i64: 32, 32>}, {transform_indices = @transform_4, window_bounds = array<i64: 1, 8, 32>}]} {
    %c0 = arith.constant 0 : index
    %c0_0 = arith.constant 0 : index
    %c0_1 = arith.constant 0 : index
    %0 = vector.load %arg1[%c0, %c0_0, %c0_1] : memref<1x8x32xf32, #tpu.memory_space<vmem>>, vector<1x8x32xf32>
    %1 = vector.shape_cast %0 : vector<1x8x32xf32> to vector<8x32xf32>
    %c0_2 = arith.constant 0 : index
    %c0_3 = arith.constant 0 : index
    %2 = vector.load %arg2[%c0_2, %c0_3] : memref<32x32xf32, #tpu.memory_space<vmem>>, vector<32x32xf32>
    %cst = arith.constant dense<0.000000e+00> : vector<8x32xf32>
    %3 = tpu.matmul %1, %2, %cst {dimension_numbers = #tpu.dot_dimension_numbers<[1], [0], [0], [1], [0, 0, 1, 1], [], []>} : vector<8x32xf32>, vector<32x32xf32>, vector<8x32xf32> -> vector<8x32xf32>
    %cst_4 = arith.constant 2.500000e-01 : f32
    %4 = vector.broadcast %cst_4 : f32 to vector<8x32xf32>
    %5 = arith.mulf %3, %4 : vector<8x32xf32>
    %c0_5 = arith.constant 0 : index
    %c0_6 = arith.constant 0 : index
    %6 = vector.load %arg3[%c0_5, %c0_6] : memref<32x32xf32, #tpu.memory_space<vmem>>, vector<32x32xf32>
    %cst_7 = arith.constant dense<0.000000e+00> : vector<8x32xf32>
    %7 = tpu.matmul %1, %6, %cst_7 {dimension_numbers = #tpu.dot_dimension_numbers<[1], [0], [0], [1], [0, 0, 1, 1], [], []>} : vector<8x32xf32>, vector<32x32xf32>, vector<8x32xf32> -> vector<8x32xf32>
    %c0_8 = arith.constant 0 : index
    %c0_9 = arith.constant 0 : index
    %8 = vector.load %arg4[%c0_8, %c0_9] : memref<32x32xf32, #tpu.memory_space<vmem>>, vector<32x32xf32>
    %cst_10 = arith.constant dense<0.000000e+00> : vector<8x32xf32>
    %9 = tpu.matmul %1, %8, %cst_10 {dimension_numbers = #tpu.dot_dimension_numbers<[1], [0], [0], [1], [0, 0, 1, 1], [], []>} : vector<8x32xf32>, vector<32x32xf32>, vector<8x32xf32> -> vector<8x32xf32>
    %10 = tpu.iota {dimensions = array<i32: 0>} : vector<8x8xi32>
    %11 = tpu.iota {dimensions = array<i32: 1>} : vector<8x8xi32>
    %12 = arith.cmpi sge, %10, %11 : vector<8x8xi32>
    %13 = vector.extract_strided_slice %5 {offsets = [0, 0], sizes = [8, 16], strides = [1, 1]} : vector<8x32xf32> to vector<8x16xf32>
    %14 = vector.extract_strided_slice %7 {offsets = [0, 0], sizes = [8, 16], strides = [1, 1]} : vector<8x32xf32> to vector<8x16xf32>
    %15 = vector.extract_strided_slice %9 {offsets = [0, 0], sizes = [8, 16], strides = [1, 1]} : vector<8x32xf32> to vector<8x16xf32>
    "tpu.trace_start"() <{level = 10 : i32, message = "qd,kd->qk"}> : () -> ()
    %cst_11 = arith.constant dense<0.000000e+00> : vector<8x8xf32>
    %16 = tpu.matmul %13, %14, %cst_11 {dimension_numbers = #tpu.dot_dimension_numbers<[1], [1], [0], [0], [0, 0, 1, 0], [], []>} : vector<8x16xf32>, vector<8x16xf32>, vector<8x8xf32> -> vector<8x8xf32>
    %cst_12 = arith.constant 0xFF800000 : f32
    "tpu.trace_stop"() : () -> ()
    %17 = vector.broadcast %cst_12 : f32 to vector<8x8xf32>
    %18 = arith.select %12, %17, %16 : vector<8x8xi1>, vector<8x8xf32>
    %cst_13 = arith.constant dense<0xFF800000> : vector<8xf32>
    %19 = vector.multi_reduction <maximumf>, %18, %cst_13 [1] : vector<8x8xf32> to vector<8xf32>
    %20 = vector.shape_cast %19 : vector<8xf32> to vector<8x1xf32>
    %21 = vector.broadcast %20 : vector<8x1xf32> to vector<8x8xf32>
    %22 = arith.subf %18, %21 : vector<8x8xf32>
    %23 = math.exp %22 : vector<8x8xf32>
    %cst_14 = arith.constant dense<0.000000e+00> : vector<8xf32>
    %24 = vector.multi_reduction <add>, %23, %cst_14 [1] : vector<8x8xf32> to vector<8xf32>
    %25 = vector.shape_cast %24 : vector<8xf32> to vector<8x1xf32>
    %26 = tpu.reciprocal %25 : vector<8x1xf32> -> vector<8x1xf32>
    %27 = vector.broadcast %26 : vector<8x1xf32> to vector<8x8xf32>
    %28 = arith.mulf %23, %27 : vector<8x8xf32>
    %cst_15 = arith.constant dense<0.000000e+00> : vector<8x16xf32>
    %29 = tpu.matmul %28, %15, %cst_15 {dimension_numbers = #tpu.dot_dimension_numbers<[1], [0], [0], [1], [0, 0, 1, 1], [], []>} : vector<8x8xf32>, vector<8x16xf32>, vector<8x16xf32> -> vector<8x16xf32>
    %30 = vector.extract_strided_slice %5 {offsets = [0, 16], sizes = [8, 16], strides = [1, 1]} : vector<8x32xf32> to vector<8x16xf32>
    %31 = vector.extract_strided_slice %7 {offsets = [0, 16], sizes = [8, 16], strides = [1, 1]} : vector<8x32xf32> to vector<8x16xf32>
    %32 = vector.extract_strided_slice %9 {offsets = [0, 16], sizes = [8, 16], strides = [1, 1]} : vector<8x32xf32> to vector<8x16xf32>
    "tpu.trace_start"() <{level = 10 : i32, message = "qd,kd->qk"}> : () -> ()
    %cst_16 = arith.constant dense<0.000000e+00> : vector<8x8xf32>
    %33 = tpu.matmul %30, %31, %cst_16 {dimension_numbers = #tpu.dot_dimension_numbers<[1], [1], [0], [0], [0, 0, 1, 0], [], []>} : vector<8x16xf32>, vector<8x16xf32>, vector<8x8xf32> -> vector<8x8xf32>
    %cst_17 = arith.constant 0xFF800000 : f32
    "tpu.trace_stop"() : () -> ()
    %34 = vector.broadcast %cst_17 : f32 to vector<8x8xf32>
    %35 = arith.select %12, %34, %33 : vector<8x8xi1>, vector<8x8xf32>
    %cst_18 = arith.constant dense<0xFF800000> : vector<8xf32>
    %36 = vector.multi_reduction <maximumf>, %35, %cst_18 [1] : vector<8x8xf32> to vector<8xf32>
    %37 = vector.shape_cast %36 : vector<8xf32> to vector<8x1xf32>
    %38 = vector.broadcast %37 : vector<8x1xf32> to vector<8x8xf32>
    %39 = arith.subf %35, %38 : vector<8x8xf32>
    %40 = math.exp %39 : vector<8x8xf32>
    %cst_19 = arith.constant dense<0.000000e+00> : vector<8xf32>
    %41 = vector.multi_reduction <add>, %40, %cst_19 [1] : vector<8x8xf32> to vector<8xf32>
    %42 = vector.shape_cast %41 : vector<8xf32> to vector<8x1xf32>
    %43 = tpu.reciprocal %42 : vector<8x1xf32> -> vector<8x1xf32>
    %44 = vector.broadcast %43 : vector<8x1xf32> to vector<8x8xf32>
    %45 = arith.mulf %40, %44 : vector<8x8xf32>
    %cst_20 = arith.constant dense<0.000000e+00> : vector<8x16xf32>
    %46 = tpu.matmul %45, %32, %cst_20 {dimension_numbers = #tpu.dot_dimension_numbers<[1], [0], [0], [1], [0, 0, 1, 1], [], []>} : vector<8x8xf32>, vector<8x16xf32>, vector<8x16xf32> -> vector<8x16xf32>
    %47 = tpu.concatenate %29, %46 in 1 : vector<8x16xf32>, vector<8x16xf32> -> vector<8x32xf32>
    %c0_21 = arith.constant 0 : index
    %c0_22 = arith.constant 0 : index
    %c0_23 = arith.constant 0 : index
    %48 = vector.load %arg5[%c0_21, %c0_22, %c0_23] : memref<1x8x32xf32, #tpu.memory_space<vmem>>, vector<1x8x32xf32>
    %49 = vector.shape_cast %48 : vector<1x8x32xf32> to vector<8x32xf32>
    %50 = vector.shape_cast %47 : vector<8x32xf32> to vector<1x8x32xf32>
    tpu.vector_store %arg5[%c0_21, %c0_22, %c0_23], %50 {strides = array<i32>} : memref<1x8x32xf32, #tpu.memory_space<vmem>>, vector<1x8x32xf32>,
    return
  }
  func.func @transform_0(%arg0: i32) -> (i32, i32, i32) {
    %c0_i32 = arith.constant 0 : i32
    %c0_i32_0 = arith.constant 0 : i32
    %c0_i32_1 = arith.constant 0 : i32
    return %arg0, %c0_i32, %c0_i32_0 : i32, i32, i32
  }
  func.func @transform_1(%arg0: i32) -> (i32, i32) {
    %c0_i32 = arith.constant 0 : i32
    %c0_i32_0 = arith.constant 0 : i32
    %c0_i32_1 = arith.constant 0 : i32
    return %c0_i32, %c0_i32_0 : i32, i32
  }
  func.func @transform_2(%arg0: i32) -> (i32, i32) {
    %c0_i32 = arith.constant 0 : i32
    %c0_i32_0 = arith.constant 0 : i32
    %c0_i32_1 = arith.constant 0 : i32
    return %c0_i32, %c0_i32_0 : i32, i32
  }
  func.func @transform_3(%arg0: i32) -> (i32, i32) {
    %c0_i32 = arith.constant 0 : i32
    %c0_i32_0 = arith.constant 0 : i32
    %c0_i32_1 = arith.constant 0 : i32
    return %c0_i32, %c0_i32_0 : i32, i32
  }
  func.func @transform_4(%arg0: i32) -> (i32, i32, i32) {
    %c0_i32 = arith.constant 0 : i32
    %c0_i32_0 = arith.constant 0 : i32
    %c0_i32_1 = arith.constant 0 : i32
    return %arg0, %c0_i32, %c0_i32_0 : i32, i32, i32
  }
}

</mosaic_0001>

<llo_original>
// kernel: inefficient_mha_forward.1
$region0: #{inefficient_mha_forward.1}
  #allocation0 [shape = 'u32[]', space=smem, size = 0x4, offset = 0x4, fixed_abs, tag = 'smem constant byte address 0x4 - core index']
  #allocation1 [shape = 'u32[144,128]{1,0:T(1,128)}', space=vmem, size = 0x12000, scoped, tag = 'internal scratch']
  %s0 = inlined_call_operand.vmem [shape: f32[2,8,32], index: 0, kind: input, shape index: {}]
  %s1 = inlined_call_operand.vmem [shape: f32[32,32], index: 1, kind: input, shape index: {}]
  %s2 = inlined_call_operand.vmem [shape: f32[32,32], index: 2, kind: input, shape index: {}]
  %s3 = inlined_call_operand.vmem [shape: f32[32,32], index: 3, kind: input, shape index: {}]
  %s4 = inlined_call_operand.hbm [shape: f32[2,8,32], index: 4, kind: output, shape index: {}]
  %s5 = sld [smem:[#allocation0]]
  $region49: #{inefficient_mha_forward.1} parent=0
    _
  %s7 = ssub.s32 1, %s5
  %s8 = scalar_select 0, %s7, %s5
  $region1: #{inefficient_mha_forward.1} parent=0
    #allocation2 [shape = 'u8[8192]{0}', space=vmem, size = 0x2000, scoped, tag = 'output window, operand 0']
    #allocation3 [shape = 's32[2]{0}', space=sflag, size = 0x8, scoped, tag = 'scoped memory for inefficient_mha_forward.1']
    %9 = vsyncpa [#allocation3], 0
    %s10 = scalar_lea.sflag [#allocation3], 1
    %11 = vsyncpa %s10, 0
    loop: start=0, step=1, limit=4
    $region2: #{inefficient_mha_forward.1} parent=1 // loop_pre_header
      _
    $region3: #{inefficient_mha_forward.1} parent=1 // loop_header
      %s13 = sphi 0, %s17
      %p14 = scmp.ge.s32.totalorder %s13, 4
      %s23 = sphi 0, %s25
      %s26 = sphi 0, %s23
      %s27 = sphi 0, %s26
      %s43 = sphi 0, %s27
      %s47 = sphi 0, %s47
      %s49 = sphi 0, %s47
      %s50 = sphi 0, %s49
      %s64 = sphi 0, %s50
      %s68 = sphi 0, %s68
      %s70 = sphi 0, %s68
      %s71 = sphi 0, %s70
      %s85 = sphi 0, %s71
      %s89 = sphi 0, %s89
      %s91 = sphi 0, %s89
      %s92 = sphi 0, %s91
      %s106 = sphi 0, %s92
      %s112 = sphi 0, %s114
      %s115 = sphi 0, %s112
      %s116 = sphi 0, %s115
      %s132 = sphi 0, %s116
    $region4: #{inefficient_mha_forward.1} parent=1 // loop_header_branch
      %16 = sbr.rel (%p14) target = $region8
    $region5: #{inefficient_mha_forward.1} parent=1 // loop_body
      %s18 = ssub.s32 %s13, 1
      %s19 = ssub.s32 %s13, 2
      %s20 = sadd.s32 %s13, 1
      %s21 = ssub.s32 %s13, %s20
      %p22 = scmp.eq.s32.totalorder %s21, 0
      %s24 = sadd.s32 %s23, 1
      %s25 = scalar_select %p22, %s23, %s24
      %p28 = pneg %p22
      %p29 = scmp.eq.s32.totalorder %s13, 1
      %p30 = por %p28, %p29
      %p31 = scmp.ne.s32.totalorder %s23, %s26
      %p32 = scmp.eq.s32.totalorder %s13, 0
      %p33 = por %p31, %p32
      %p34 = scmp.ne.s32.totalorder %s23, %s26
      %p35 = scmp.eq.s32.totalorder %s18, 1
      %p36 = por %p34, %p35
      %p37 = scmp.ne.s32.totalorder %s26, %s27
      %p38 = scmp.eq.s32.totalorder %s18, 0
      %p39 = por %p37, %p38
      %p40 = scmp.ne.s32.totalorder %s26, %s27
      %p41 = scmp.eq.s32.totalorder %s19, 1
      %p42 = por %p40, %p41
      %p44 = scmp.ne.s32.totalorder %s27, %s43
      %p45 = scmp.eq.s32.totalorder %s19, 0
      %p46 = por %p44, %p45
      %s48 = sadd.s32 %s47, 1
      %p51 = scmp.eq.s32.totalorder %s13, 1
      %p52 = scmp.ne.s32.totalorder %s47, %s49
      %p53 = scmp.eq.s32.totalorder %s13, 0
      %p54 = por %p52, %p53
      %p55 = scmp.ne.s32.totalorder %s47, %s49
      %p56 = scmp.eq.s32.totalorder %s18, 1
      %p57 = por %p55, %p56
      %p58 = scmp.ne.s32.totalorder %s49, %s50
      %p59 = scmp.eq.s32.totalorder %s18, 0
      %p60 = por %p58, %p59
      %p61 = scmp.ne.s32.totalorder %s49, %s50
      %p62 = scmp.eq.s32.totalorder %s19, 1
      %p63 = por %p61, %p62
      %p65 = scmp.ne.s32.totalorder %s50, %s64
      %p66 = scmp.eq.s32.totalorder %s19, 0
      %p67 = por %p65, %p66
      %s69 = sadd.s32 %s68, 1
      %p72 = scmp.eq.s32.totalorder %s13, 1
      %p73 = scmp.ne.s32.totalorder %s68, %s70
      %p74 = scmp.eq.s32.totalorder %s13, 0
      %p75 = por %p73, %p74
      %p76 = scmp.ne.s32.totalorder %s68, %s70
      %p77 = scmp.eq.s32.totalorder %s18, 1
      %p78 = por %p76, %p77
      %p79 = scmp.ne.s32.totalorder %s70, %s71
      %p80 = scmp.eq.s32.totalorder %s18, 0
      %p81 = por %p79, %p80
      %p82 = scmp.ne.s32.totalorder %s70, %s71
      %p83 = scmp.eq.s32.totalorder %s19, 1
      %p84 = por %p82, %p83
      %p86 = scmp.ne.s32.totalorder %s71, %s85
      %p87 = scmp.eq.s32.totalorder %s19, 0
      %p88 = por %p86, %p87
      %s90 = sadd.s32 %s89, 1
      %p93 = scmp.eq.s32.totalorder %s13, 1
      %p94 = scmp.ne.s32.totalorder %s89, %s91
      %p95 = scmp.eq.s32.totalorder %s13, 0
      %p96 = por %p94, %p95
      %p97 = scmp.ne.s32.totalorder %s89, %s91
      %p98 = scmp.eq.s32.totalorder %s18, 1
      %p99 = por %p97, %p98
      %p100 = scmp.ne.s32.totalorder %s91, %s92
      %p101 = scmp.eq.s32.totalorder %s18, 0
      %p102 = por %p100, %p101
      %p103 = scmp.ne.s32.totalorder %s91, %s92
      %p104 = scmp.eq.s32.totalorder %s19, 1
      %p105 = por %p103, %p104
      %p107 = scmp.ne.s32.totalorder %s92, %s106
      %p108 = scmp.eq.s32.totalorder %s19, 0
      %p109 = por %p107, %p108
      %s110 = ssub.s32 %s13, %s20
      %p111 = scmp.eq.s32.totalorder %s110, 0
      %s113 = sadd.s32 %s112, 1
      %s114 = scalar_select %p111, %s112, %s113
      %p117 = pneg %p111
      %p118 = scmp.eq.s32.totalorder %s13, 1
      %p119 = por %p117, %p118
      %p120 = scmp.ne.s32.totalorder %s112, %s115
      %p121 = scmp.eq.s32.totalorder %s13, 0
      %p122 = por %p120, %p121
      %p123 = scmp.ne.s32.totalorder %s112, %s115
      %p124 = scmp.eq.s32.totalorder %s18, 1
      %p125 = por %p123, %p124
      %p126 = scmp.ne.s32.totalorder %s115, %s116
      %p127 = scmp.eq.s32.totalorder %s18, 0
      %p128 = por %p126, %p127
      %p129 = scmp.ne.s32.totalorder %s115, %s116
      %p130 = scmp.eq.s32.totalorder %s19, 1
      %p131 = por %p129, %p130
      %p133 = scmp.ne.s32.totalorder %s116, %s132
      %p134 = scmp.eq.s32.totalorder %s19, 0
      %p135 = por %p133, %p134
      %p136 = scmp.le.s32.totalorder 1, %s13
      %p137 = scmp.lt.s32.totalorder %s13, 3
      %p138 = pnand %p136, %p137
      %p139 = pneg %p138
      // Predicated region
      $region9: #{inefficient_mha_forward.1} parent=5 // pred_check
        _
      $region10: #{inefficient_mha_forward.1} parent=5 // pred_check_branch
        %141 = sbr.rel (%p138) target = $region12
      $region11: #{inefficient_mha_forward.1} parent=5 // pred_region
        %s142 = ssub.s32 %s13, 1
        // Predicated region
        $region13: #{inefficient_mha_forward.1} parent=11 // pred_check
          %p143 = pneg %p60
        $region14: #{inefficient_mha_forward.1} parent=11 // pred_check_branch
          %145 = sbr.rel (%p143) target = $region16
        $region15: #{inefficient_mha_forward.1} parent=11 // pred_region
          _
        $region16: #{inefficient_mha_forward.1} parent=11 // pred_fallthru
          _
        // Predicated region
        $region17: #{inefficient_mha_forward.1} parent=11 // pred_check
          %p146 = pneg %p81
        $region18: #{inefficient_mha_forward.1} parent=11 // pred_check_branch
          %148 = sbr.rel (%p146) target = $region20
        $region19: #{inefficient_mha_forward.1} parent=11 // pred_region
          _
        $region20: #{inefficient_mha_forward.1} parent=11 // pred_fallthru
          _
        // Predicated region
        $region21: #{inefficient_mha_forward.1} parent=11 // pred_check
          %p149 = pneg %p102
        $region22: #{inefficient_mha_forward.1} parent=11 // pred_check_branch
          %151 = sbr.rel (%p149) target = $region24
        $region23: #{inefficient_mha_forward.1} parent=11 // pred_region
          _
        $region24: #{inefficient_mha_forward.1} parent=11 // pred_fallthru
          _
      $region12: #{inefficient_mha_forward.1} parent=5 // pred_fallthru
        _
      %p152 = scmp.lt.s32.totalorder %s13, 2
      // Predicated region
      $region25: #{inefficient_mha_forward.1} parent=5 // pred_check
        %p153 = pneg %p152
      $region26: #{inefficient_mha_forward.1} parent=5 // pred_check_branch
        %155 = sbr.rel (%p153) target = $region28
      $region27: #{inefficient_mha_forward.1} parent=5 // pred_region
        // Predicated region
        $region29: #{inefficient_mha_forward.1} parent=27 // pred_check
          %p156 = pneg %p33
        $region30: #{inefficient_mha_forward.1} parent=27 // pred_check_branch
          %158 = sbr.rel (%p156) target = $region32
        $region31: #{inefficient_mha_forward.1} parent=27 // pred_region
          %p159 = scmp.lt.s32.totalorder %s13, 1
          %s160 = scalar_select %p159, %s13, 1
          %s161 = smul.addr %s160, 8
          %s162 = scalar_lea.vmem %s0, %s161
        $region32: #{inefficient_mha_forward.1} parent=27 // pred_fallthru
          _
      $region28: #{inefficient_mha_forward.1} parent=5 // pred_fallthru
        _
      %p163 = scmp.le.s32.totalorder 1, %s13
      %p164 = scmp.lt.s32.totalorder %s13, 3
      %p165 = pnand %p163, %p164
      %p166 = pneg %p165
      // Predicated region
      $region33: #{inefficient_mha_forward.1} parent=5 // pred_check
        _
      $region34: #{inefficient_mha_forward.1} parent=5 // pred_check_branch
        %168 = sbr.rel (%p165) target = $region36
      $region35: #{inefficient_mha_forward.1} parent=5 // pred_region
        %s169 = ssub.s32 %s13, 1
        %p170 = scmp.lt.s32.totalorder %s18, 1
        %s171 = scalar_select %p170, %s18, 1
        %s172 = smul.addr %s171, 8
        %s173 = scalar_lea.vmem %s0, %s172
        %p174 = pneg %p39
        %p175 = pneg %p36
        %p176 = pneg %p60
        %p177 = pneg %p57
        %p178 = pneg %p81
        %p179 = pneg %p78
        %p180 = pneg %p102
        %p181 = pneg %p99
        %p182 = pneg %p128
        %p183 = pneg %p125
        %s184 = sand.u32 %s115, 1
        %s185 = scalar_lea.sflag [#allocation3], %s184
        %s186 = sand.u32 %s115, 1
        %s187 = smul.addr %s186, 8
        %s188 = scalar_lea.vmem [#allocation2], %s187
        %p189 = scmp.lt.s32.totalorder %s18, 1
        %s190 = scalar_select %p189, %s18, 1
        %s191 = smul.addr %s190, 8
        %s192 = scalar_lea.vmem %s0, %s191
        %v193 = vld [vmem:[%s192] sm:$0xff]
        %v194 = vld [vmem:[%s1] sm:$0xff]
        %v195 = vld [vmem:[%s1 + $0x8] sm:$0xff]
        %v196 = vld [vmem:[%s1 + $0x10] sm:$0xff]
        %v197 = vld [vmem:[%s1 + $0x18] sm:$0xff]
        %vm198 = vcmask 261120
        %v200 = vsel %vm198, %v193, 0
        %202 = vmatprep.subr.mxu0 0.0
        %203 = vmatpush1.msra.mxu0 0.0
        %204 = vmatprep.subr.mxu0 0.0
        %205 = vmatpush1.msra.mxu0 0.0
        %206 = vmatprep.subr.mxu0 0.0
        %207 = vmatpush1.msra.mxu0 0.0
        %208 = vmatprep.subr.mxu0 0.0
        %209 = vmatpush1.msra.mxu0 0.0
        %210 = vmatprep.subr.mxu0 0.0
        %211 = vmatpush1.msra.mxu0 0.0
        %212 = vmatprep.subr.mxu0 0.0
        %213 = vmatpush1.msra.mxu0 0.0
        %214 = vmatprep.subr.mxu0 0.0
        %215 = vmatpush1.msra.mxu0 0.0
        %216 = vmatprep.subr.mxu0 0.0
        %217 = vmatpush1.msra.mxu0 0.0
        %218 = vmatprep.subr.mxu0 0.0
        %219 = vmatpush1.msra.mxu0 0.0
        %220 = vmatprep.subr.mxu0 0.0
        %221 = vmatpush1.msra.mxu0 0.0
        %222 = vmatprep.subr.mxu0 0.0
        %223 = vmatpush1.msra.mxu0 0.0
        %224 = vmatprep.subr.mxu0 0.0
        %225 = vmatpush1.msra.mxu0 0.0
        %226 = vmatprep.subr.mxu0 0.0
        %227 = vmatpush1.msra.mxu0 %v197
        %228 = vmatprep.subr.mxu0 0.0
        %229 = vmatpush1.msra.mxu0 %v196
        %230 = vmatprep.subr.mxu0 0.0
        %231 = vmatpush1.msra.mxu0 %v195
        %232 = vmatprep.subr.mxu0 0.0
        %233 = vmatpush1.msra.mxu0 %v194
        %234 = vmatprep.subr.mxu0 0.0
        %235 = vmatpush2.msra.mxu0 0.0
        %236 = vmatprep.subr.mxu0 0.0
        %237 = vmatpush2.msra.mxu0 0.0
        %238 = vmatprep.subr.mxu0 0.0
        %239 = vmatpush2.msra.mxu0 0.0
        %240 = vmatprep.subr.mxu0 0.0
        %241 = vmatpush2.msra.mxu0 0.0
        %242 = vmatprep.subr.mxu0 0.0
        %243 = vmatpush2.msra.mxu0 0.0
        %244 = vmatprep.subr.mxu0 0.0
        %245 = vmatpush2.msra.mxu0 0.0
        %246 = vmatprep.subr.mxu0 0.0
        %247 = vmatpush2.msra.mxu0 0.0
        %248 = vmatprep.subr.mxu0 0.0
        %249 = vmatpush2.msra.mxu0 0.0
        %250 = vmatprep.subr.mxu0 0.0
        %251 = vmatpush2.msra.mxu0 0.0
        %252 = vmatprep.subr.mxu0 0.0
        %253 = vmatpush2.msra.mxu0 0.0
        %254 = vmatprep.subr.mxu0 0.0
        %255 = vmatpush2.msra.mxu0 0.0
        %256 = vmatprep.subr.mxu0 0.0
        %257 = vmatpush2.msra.mxu0 0.0
        %258 = vmatprep.subr.mxu0 0.0
        %259 = vmatpush2.msra.mxu0 0.0
        %260 = vmatprep.subr.mxu0 0.0
        %261 = vmatpush2.msra.mxu0 0.0
        %262 = vmatprep.subr.mxu0 0.0
        %263 = vmatpush2.msra.mxu0 0.0
        %264 = vmatprep.subr.mxu0 0.0
        %265 = vmatpush2.msra.mxu0 0.0
        %266 = vmatprep.mubr.f32.mxu0 0.0
        %267 = vmatmul.mubr.f32.gmra.mxu0 %v200
        %v268 = vpop.f32.mrf.mxu0
        %v269 = vadd.f32 0.0, %v268
        %v270 = vpop.f32.mrf.mxu0
        %271 = vdwg.mxu0
        %v272 = vmul.f32 %v269, 0.25
        %v273 = vld [vmem:[%s2] sm:$0xff]
        %v274 = vld [vmem:[%s2 + $0x8] sm:$0xff]
        %v275 = vld [vmem:[%s2 + $0x10] sm:$0xff]
        %v276 = vld [vmem:[%s2 + $0x18] sm:$0xff]
        %277 = vmatprep.subr.mxu0 0.0
        %278 = vmatpush1.msra.mxu0 0.0
        %279 = vmatprep.subr.mxu0 0.0
        %280 = vmatpush1.msra.mxu0 0.0
        %281 = vmatprep.subr.mxu0 0.0
        %282 = vmatpush1.msra.mxu0 0.0
        %283 = vmatprep.subr.mxu0 0.0
        %284 = vmatpush1.msra.mxu0 0.0
        %285 = vmatprep.subr.mxu0 0.0
        %286 = vmatpush1.msra.mxu0 0.0
        %287 = vmatprep.subr.mxu0 0.0
        %288 = vmatpush1.msra.mxu0 0.0
        %289 = vmatprep.subr.mxu0 0.0
        %290 = vmatpush1.msra.mxu0 0.0
        %291 = vmatprep.subr.mxu0 0.0
        %292 = vmatpush1.msra.mxu0 0.0
        %293 = vmatprep.subr.mxu0 0.0
        %294 = vmatpush1.msra.mxu0 0.0
        %295 = vmatprep.subr.mxu0 0.0
        %296 = vmatpush1.msra.mxu0 0.0
        %297 = vmatprep.subr.mxu0 0.0
        %298 = vmatpush1.msra.mxu0 0.0
        %299 = vmatprep.subr.mxu0 0.0
        %300 = vmatpush1.msra.mxu0 0.0
        %301 = vmatprep.subr.mxu0 0.0
        %302 = vmatpush1.msra.mxu0 %v276
        %303 = vmatprep.subr.mxu0 0.0
        %304 = vmatpush1.msra.mxu0 %v275
        %305 = vmatprep.subr.mxu0 0.0
        %306 = vmatpush1.msra.mxu0 %v274
        %307 = vmatprep.subr.mxu0 0.0
        %308 = vmatpush1.msra.mxu0 %v273
        %309 = vmatprep.subr.mxu0 0.0
        %310 = vmatpush2.msra.mxu0 0.0
        %311 = vmatprep.subr.mxu0 0.0
        %312 = vmatpush2.msra.mxu0 0.0
        %313 = vmatprep.subr.mxu0 0.0
        %314 = vmatpush2.msra.mxu0 0.0
        %315 = vmatprep.subr.mxu0 0.0
        %316 = vmatpush2.msra.mxu0 0.0
        %317 = vmatprep.subr.mxu0 0.0
        %318 = vmatpush2.msra.mxu0 0.0
        %319 = vmatprep.subr.mxu0 0.0
        %320 = vmatpush2.msra.mxu0 0.0
        %321 = vmatprep.subr.mxu0 0.0
        %322 = vmatpush2.msra.mxu0 0.0
        %323 = vmatprep.subr.mxu0 0.0
        %324 = vmatpush2.msra.mxu0 0.0
        %325 = vmatprep.subr.mxu0 0.0
        %326 = vmatpush2.msra.mxu0 0.0
        %327 = vmatprep.subr.mxu0 0.0
        %328 = vmatpush2.msra.mxu0 0.0
        %329 = vmatprep.subr.mxu0 0.0
        %330 = vmatpush2.msra.mxu0 0.0
        %331 = vmatprep.subr.mxu0 0.0
        %332 = vmatpush2.msra.mxu0 0.0
        %333 = vmatprep.subr.mxu0 0.0
        %334 = vmatpush2.msra.mxu0 0.0
        %335 = vmatprep.subr.mxu0 0.0
        %336 = vmatpush2.msra.mxu0 0.0
        %337 = vmatprep.subr.mxu0 0.0
        %338 = vmatpush2.msra.mxu0 0.0
        %339 = vmatprep.subr.mxu0 0.0
        %340 = vmatpush2.msra.mxu0 0.0
        %341 = vmatprep.mubr.f32.mxu0 0.0
        %342 = vmatmul.mubr.f32.gmra.mxu0 %v200
        %v343 = vpop.f32.mrf.mxu0
        %v344 = vadd.f32 0.0, %v343
        %v345 = vpop.f32.mrf.mxu0
        %346 = vdwg.mxu0
        %v347 = vld [vmem:[%s3] sm:$0xff]
        %v348 = vld [vmem:[%s3 + $0x8] sm:$0xff]
        %v349 = vld [vmem:[%s3 + $0x10] sm:$0xff]
        %v350 = vld [vmem:[%s3 + $0x18] sm:$0xff]
        %351 = vmatprep.subr.mxu0 0.0
        %352 = vmatpush1.msra.mxu0 0.0
        %353 = vmatprep.subr.mxu0 0.0
        %354 = vmatpush1.msra.mxu0 0.0
        %355 = vmatprep.subr.mxu0 0.0
        %356 = vmatpush1.msra.mxu0 0.0
        %357 = vmatprep.subr.mxu0 0.0
        %358 = vmatpush1.msra.mxu0 0.0
        %359 = vmatprep.subr.mxu0 0.0
        %360 = vmatpush1.msra.mxu0 0.0
        %361 = vmatprep.subr.mxu0 0.0
        %362 = vmatpush1.msra.mxu0 0.0
        %363 = vmatprep.subr.mxu0 0.0
        %364 = vmatpush1.msra.mxu0 0.0
        %365 = vmatprep.subr.mxu0 0.0
        %366 = vmatpush1.msra.mxu0 0.0
        %367 = vmatprep.subr.mxu0 0.0
        %368 = vmatpush1.msra.mxu0 0.0
        %369 = vmatprep.subr.mxu0 0.0
        %370 = vmatpush1.msra.mxu0 0.0
        %371 = vmatprep.subr.mxu0 0.0
        %372 = vmatpush1.msra.mxu0 0.0
        %373 = vmatprep.subr.mxu0 0.0
        %374 = vmatpush1.msra.mxu0 0.0
        %375 = vmatprep.subr.mxu0 0.0
        %376 = vmatpush1.msra.mxu0 %v350
        %377 = vmatprep.subr.mxu0 0.0
        %378 = vmatpush1.msra.mxu0 %v349
        %379 = vmatprep.subr.mxu0 0.0
        %380 = vmatpush1.msra.mxu0 %v348
        %381 = vmatprep.subr.mxu0 0.0
        %382 = vmatpush1.msra.mxu0 %v347
        %383 = vmatprep.subr.mxu0 0.0
        %384 = vmatpush2.msra.mxu0 0.0
        %385 = vmatprep.subr.mxu0 0.0
        %386 = vmatpush2.msra.mxu0 0.0
        %387 = vmatprep.subr.mxu0 0.0
        %388 = vmatpush2.msra.mxu0 0.0
        %389 = vmatprep.subr.mxu0 0.0
        %390 = vmatpush2.msra.mxu0 0.0
        %391 = vmatprep.subr.mxu0 0.0
        %392 = vmatpush2.msra.mxu0 0.0
        %393 = vmatprep.subr.mxu0 0.0
        %394 = vmatpush2.msra.mxu0 0.0
        %395 = vmatprep.subr.mxu0 0.0
        %396 = vmatpush2.msra.mxu0 0.0
        %397 = vmatprep.subr.mxu0 0.0
        %398 = vmatpush2.msra.mxu0 0.0
        %399 = vmatprep.subr.mxu0 0.0
        %400 = vmatpush2.msra.mxu0 0.0
        %401 = vmatprep.subr.mxu0 0.0
        %402 = vmatpush2.msra.mxu0 0.0
        %403 = vmatprep.subr.mxu0 0.0
        %404 = vmatpush2.msra.mxu0 0.0
        %405 = vmatprep.subr.mxu0 0.0
        %406 = vmatpush2.msra.mxu0 0.0
        %407 = vmatprep.subr.mxu0 0.0
        %408 = vmatpush2.msra.mxu0 0.0
        %409 = vmatprep.subr.mxu0 0.0
        %410 = vmatpush2.msra.mxu0 0.0
        %411 = vmatprep.subr.mxu0 0.0
        %412 = vmatpush2.msra.mxu0 0.0
        %413 = vmatprep.subr.mxu0 0.0
        %414 = vmatpush2.msra.mxu0 0.0
        %415 = vmatprep.mubr.f32.mxu0 0.0
        %416 = vmatmul.mubr.f32.gmra.mxu0 %v200
        %v417 = vpop.f32.mrf.mxu0
        %v418 = vadd.f32 0.0, %v417
        %v419 = vpop.f32.mrf.mxu0
        %420 = vdwg.mxu0
        %v421 = vlaneseq
        %v422 = vshrl.u32 %v421, 7
        %v423 = vlaneseq
        %v424 = vand.u32 %v423, 127
        %vm425 = vcmp.ge.s32.totalorder %v422, %v424
        %vm426 = vcmask 130048
        %v428 = vsel %vm426, %v272, 0
        %v431 = vsel %vm426, %v344, 0
        %433 = vmatprep.subr.mxu0 0.0
        %434 = vmatpush1.xpose.msra.mxu0 0.0
        %435 = vmatprep.subr.mxu0 0.0
        %436 = vmatpush1.xpose.msra.mxu0 0.0
        %437 = vmatprep.subr.mxu0 0.0
        %438 = vmatpush1.xpose.msra.mxu0 0.0
        %439 = vmatprep.subr.mxu0 0.0
        %440 = vmatpush1.xpose.msra.mxu0 0.0
        %441 = vmatprep.subr.mxu0 0.0
        %442 = vmatpush1.xpose.msra.mxu0 0.0
        %443 = vmatprep.subr.mxu0 0.0
        %444 = vmatpush1.xpose.msra.mxu0 0.0
        %445 = vmatprep.subr.mxu0 0.0
        %446 = vmatpush1.xpose.msra.mxu0 0.0
        %447 = vmatprep.subr.mxu0 0.0
        %448 = vmatpush1.xpose.msra.mxu0 0.0
        %449 = vmatprep.subr.mxu0 0.0
        %450 = vmatpush1.xpose.msra.mxu0 0.0
        %451 = vmatprep.subr.mxu0 0.0
        %452 = vmatpush1.xpose.msra.mxu0 0.0
        %453 = vmatprep.subr.mxu0 0.0
        %454 = vmatpush1.xpose.msra.mxu0 0.0
        %455 = vmatprep.subr.mxu0 0.0
        %456 = vmatpush1.xpose.msra.mxu0 0.0
        %457 = vmatprep.subr.mxu0 0.0
        %458 = vmatpush1.xpose.msra.mxu0 0.0
        %459 = vmatprep.subr.mxu0 0.0
        %460 = vmatpush1.xpose.msra.mxu0 0.0
        %461 = vmatprep.subr.mxu0 0.0
        %462 = vmatpush1.xpose.msra.mxu0 0.0
        %463 = vmatprep.subr.mxu0 0.0
        %464 = vmatpush1.xpose.msra.mxu0 %v431
        %465 = vmatprep.subr.mxu0 0.0
        %466 = vmatpush2.xpose.msra.mxu0 0.0
        %467 = vmatprep.subr.mxu0 0.0
        %468 = vmatpush2.xpose.msra.mxu0 0.0
        %469 = vmatprep.subr.mxu0 0.0
        %470 = vmatpush2.xpose.msra.mxu0 0.0
        %471 = vmatprep.subr.mxu0 0.0
        %472 = vmatpush2.xpose.msra.mxu0 0.0
        %473 = vmatprep.subr.mxu0 0.0
        %474 = vmatpush2.xpose.msra.mxu0 0.0
        %475 = vmatprep.subr.mxu0 0.0
        %476 = vmatpush2.xpose.msra.mxu0 0.0
        %477 = vmatprep.subr.mxu0 0.0
        %478 = vmatpush2.xpose.msra.mxu0 0.0
        %479 = vmatprep.subr.mxu0 0.0
        %480 = vmatpush2.xpose.msra.mxu0 0.0
        %481 = vmatprep.subr.mxu0 0.0
        %482 = vmatpush2.xpose.msra.mxu0 0.0
        %483 = vmatprep.subr.mxu0 0.0
        %484 = vmatpush2.xpose.msra.mxu0 0.0
        %485 = vmatprep.subr.mxu0 0.0
        %486 = vmatpush2.xpose.msra.mxu0 0.0
        %487 = vmatprep.subr.mxu0 0.0
        %488 = vmatpush2.xpose.msra.mxu0 0.0
        %489 = vmatprep.subr.mxu0 0.0
        %490 = vmatpush2.xpose.msra.mxu0 0.0
        %491 = vmatprep.subr.mxu0 0.0
        %492 = vmatpush2.xpose.msra.mxu0 0.0
        %493 = vmatprep.subr.mxu0 0.0
        %494 = vmatpush2.xpose.msra.mxu0 0.0
        %495 = vmatprep.subr.mxu0 0.0
        %496 = vmatpush2.xpose.msra.mxu0 0.0
        %497 = vmatprep.mubr.f32.mxu0 0.0
        %498 = vmatmul.mubr.f32.gmra.mxu0 %v428
        %v499 = vpop.f32.mrf.mxu0
        %v500 = vadd.f32 0.0, %v499
        %v501 = vpop.f32.mrf.mxu0
        %502 = vdwg.mxu0
        %v503 = vsel %vm425, -inf, %v500
        %vm504 = vcmask 64512
        %v505 = vsel %vm504, %v503, -inf
        %506 = vmax.xlane.f32.xlu0 %v505
        %v507 = vpop.xlane.xlu0 %506
        %v508 = vsub.f32 %v503, %v507
        %v509 = vmul.f32 %v508, 1.442695
        %v510 = vpow.pop %v509
        %v511 = vsel %vm504, %v510, 0.0
        %512 = vadd.xlane.f32.xlu0 %v511
        %v513 = vpop.xlane.xlu0 %512
        %v514 = vrcp.pop %v513
        %v515 = vmul.f32 %v510, %v514
        %v517 = vsel %vm504, %v515, 0
        %519 = vmatprep.subr.mxu0 0.0
        %520 = vmatpush1.msra.mxu0 0.0
        %521 = vmatprep.subr.mxu0 0.0
        %522 = vmatpush1.msra.mxu0 0.0
        %523 = vmatprep.subr.mxu0 0.0
        %524 = vmatpush1.msra.mxu0 0.0
        %525 = vmatprep.subr.mxu0 0.0
        %526 = vmatpush1.msra.mxu0 0.0
        %527 = vmatprep.subr.mxu0 0.0
        %528 = vmatpush1.msra.mxu0 0.0
        %529 = vmatprep.subr.mxu0 0.0
        %530 = vmatpush1.msra.mxu0 0.0
        %531 = vmatprep.subr.mxu0 0.0
        %532 = vmatpush1.msra.mxu0 0.0
        %533 = vmatprep.subr.mxu0 0.0
        %534 = vmatpush1.msra.mxu0 0.0
        %535 = vmatprep.subr.mxu0 0.0
        %536 = vmatpush1.msra.mxu0 0.0
        %537 = vmatprep.subr.mxu0 0.0
        %538 = vmatpush1.msra.mxu0 0.0
        %539 = vmatprep.subr.mxu0 0.0
        %540 = vmatpush1.msra.mxu0 0.0
        %541 = vmatprep.subr.mxu0 0.0
        %542 = vmatpush1.msra.mxu0 0.0
        %543 = vmatprep.subr.mxu0 0.0
        %544 = vmatpush1.msra.mxu0 0.0
        %545 = vmatprep.subr.mxu0 0.0
        %546 = vmatpush1.msra.mxu0 0.0
        %547 = vmatprep.subr.mxu0 0.0
        %548 = vmatpush1.msra.mxu0 0.0
        %549 = vmatprep.subr.mxu0 0.0
        %550 = vmatpush1.msra.mxu0 %v418
        %551 = vmatprep.subr.mxu0 0.0
        %552 = vmatpush2.msra.mxu0 0.0
        %553 = vmatprep.subr.mxu0 0.0
        %554 = vmatpush2.msra.mxu0 0.0
        %555 = vmatprep.subr.mxu0 0.0
        %556 = vmatpush2.msra.mxu0 0.0
        %557 = vmatprep.subr.mxu0 0.0
        %558 = vmatpush2.msra.mxu0 0.0
        %559 = vmatprep.subr.mxu0 0.0
        %560 = vmatpush2.msra.mxu0 0.0
        %561 = vmatprep.subr.mxu0 0.0
        %562 = vmatpush2.msra.mxu0 0.0
        %563 = vmatprep.subr.mxu0 0.0
        %564 = vmatpush2.msra.mxu0 0.0
        %565 = vmatprep.subr.mxu0 0.0
        %566 = vmatpush2.msra.mxu0 0.0
        %567 = vmatprep.subr.mxu0 0.0
        %568 = vmatpush2.msra.mxu0 0.0
        %569 = vmatprep.subr.mxu0 0.0
        %570 = vmatpush2.msra.mxu0 0.0
        %571 = vmatprep.subr.mxu0 0.0
        %572 = vmatpush2.msra.mxu0 0.0
        %573 = vmatprep.subr.mxu0 0.0
        %574 = vmatpush2.msra.mxu0 0.0
        %575 = vmatprep.subr.mxu0 0.0
        %576 = vmatpush2.msra.mxu0 0.0
        %577 = vmatprep.subr.mxu0 0.0
        %578 = vmatpush2.msra.mxu0 0.0
        %579 = vmatprep.subr.mxu0 0.0
        %580 = vmatpush2.msra.mxu0 0.0
        %581 = vmatprep.subr.mxu0 0.0
        %582 = vmatpush2.msra.mxu0 0.0
        %583 = vmatprep.mubr.f32.mxu0 0.0
        %584 = vmatmul.mubr.f32.gmra.mxu0 %v517
        %v585 = vpop.f32.mrf.mxu0
        %v586 = vadd.f32 0.0, %v585
        %v587 = vpop.f32.mrf.mxu0
        %588 = vdwg.mxu0
        %589 = vrot.lane.b32.xlu0 %v272, 112
        %v590 = vpop.permute.xlu0 %589
        %591 = vrot.lane.b32.xlu0 %v344, 112
        %v592 = vpop.permute.xlu0 %591
        %v593 = vsel %vm426, %v590, 0
        %v595 = vsel %vm426, %v592, 0
        %597 = vmatprep.subr.mxu0 0.0
        %598 = vmatpush1.xpose.msra.mxu0 0.0
        %599 = vmatprep.subr.mxu0 0.0
        %600 = vmatpush1.xpose.msra.mxu0 0.0
        %601 = vmatprep.subr.mxu0 0.0
        %602 = vmatpush1.xpose.msra.mxu0 0.0
        %603 = vmatprep.subr.mxu0 0.0
        %604 = vmatpush1.xpose.msra.mxu0 0.0
        %605 = vmatprep.subr.mxu0 0.0
        %606 = vmatpush1.xpose.msra.mxu0 0.0
        %607 = vmatprep.subr.mxu0 0.0
        %608 = vmatpush1.xpose.msra.mxu0 0.0
        %609 = vmatprep.subr.mxu0 0.0
        %610 = vmatpush1.xpose.msra.mxu0 0.0
        %611 = vmatprep.subr.mxu0 0.0
        %612 = vmatpush1.xpose.msra.mxu0 0.0
        %613 = vmatprep.subr.mxu0 0.0
        %614 = vmatpush1.xpose.msra.mxu0 0.0
        %615 = vmatprep.subr.mxu0 0.0
        %616 = vmatpush1.xpose.msra.mxu0 0.0
        %617 = vmatprep.subr.mxu0 0.0
        %618 = vmatpush1.xpose.msra.mxu0 0.0
        %619 = vmatprep.subr.mxu0 0.0
        %620 = vmatpush1.xpose.msra.mxu0 0.0
        %621 = vmatprep.subr.mxu0 0.0
        %622 = vmatpush1.xpose.msra.mxu0 0.0
        %623 = vmatprep.subr.mxu0 0.0
        %624 = vmatpush1.xpose.msra.mxu0 0.0
        %625 = vmatprep.subr.mxu0 0.0
        %626 = vmatpush1.xpose.msra.mxu0 0.0
        %627 = vmatprep.subr.mxu0 0.0
        %628 = vmatpush1.xpose.msra.mxu0 %v595
        %629 = vmatprep.subr.mxu0 0.0
        %630 = vmatpush2.xpose.msra.mxu0 0.0
        %631 = vmatprep.subr.mxu0 0.0
        %632 = vmatpush2.xpose.msra.mxu0 0.0
        %633 = vmatprep.subr.mxu0 0.0
        %634 = vmatpush2.xpose.msra.mxu0 0.0
        %635 = vmatprep.subr.mxu0 0.0
        %636 = vmatpush2.xpose.msra.mxu0 0.0
        %637 = vmatprep.subr.mxu0 0.0
        %638 = vmatpush2.xpose.msra.mxu0 0.0
        %639 = vmatprep.subr.mxu0 0.0
        %640 = vmatpush2.xpose.msra.mxu0 0.0
        %641 = vmatprep.subr.mxu0 0.0
        %642 = vmatpush2.xpose.msra.mxu0 0.0
        %643 = vmatprep.subr.mxu0 0.0
        %644 = vmatpush2.xpose.msra.mxu0 0.0
        %645 = vmatprep.subr.mxu0 0.0
        %646 = vmatpush2.xpose.msra.mxu0 0.0
        %647 = vmatprep.subr.mxu0 0.0
        %648 = vmatpush2.xpose.msra.mxu0 0.0
        %649 = vmatprep.subr.mxu0 0.0
        %650 = vmatpush2.xpose.msra.mxu0 0.0
        %651 = vmatprep.subr.mxu0 0.0
        %652 = vmatpush2.xpose.msra.mxu0 0.0
        %653 = vmatprep.subr.mxu0 0.0
        %654 = vmatpush2.xpose.msra.mxu0 0.0
        %655 = vmatprep.subr.mxu0 0.0
        %656 = vmatpush2.xpose.msra.mxu0 0.0
        %657 = vmatprep.subr.mxu0 0.0
        %658 = vmatpush2.xpose.msra.mxu0 0.0
        %659 = vmatprep.subr.mxu0 0.0
        %660 = vmatpush2.xpose.msra.mxu0 0.0
        %661 = vmatprep.mubr.f32.mxu0 0.0
        %662 = vmatmul.mubr.f32.gmra.mxu0 %v593
        %v663 = vpop.f32.mrf.mxu0
        %v664 = vadd.f32 0.0, %v663
        %v665 = vpop.f32.mrf.mxu0
        %666 = vdwg.mxu0
        %v667 = vsel %vm425, -inf, %v664
        %v668 = vsel %vm504, %v667, -inf
        %669 = vmax.xlane.f32.xlu0 %v668
        %v670 = vpop.xlane.xlu0 %669
        %v671 = vsub.f32 %v667, %v670
        %v672 = vmul.f32 %v671, 1.442695
        %v673 = vpow.pop %v672
        %v674 = vsel %vm504, %v673, 0.0
        %675 = vadd.xlane.f32.xlu0 %v674
        %v676 = vpop.xlane.xlu0 %675
        %v677 = vrcp.pop %v676
        %v678 = vmul.f32 %v673, %v677
        %680 = vrot.lane.b32.xlu0 %v418, 112
        %v681 = vpop.permute.xlu0 %680
        %v684 = vsel %vm504, %v678, 0
        %686 = vmatprep.subr.mxu0 0.0
        %687 = vmatpush1.msra.mxu0 0.0
        %688 = vmatprep.subr.mxu0 0.0
        %689 = vmatpush1.msra.mxu0 0.0
        %690 = vmatprep.subr.mxu0 0.0
        %691 = vmatpush1.msra.mxu0 0.0
        %692 = vmatprep.subr.mxu0 0.0
        %693 = vmatpush1.msra.mxu0 0.0
        %694 = vmatprep.subr.mxu0 0.0
        %695 = vmatpush1.msra.mxu0 0.0
        %696 = vmatprep.subr.mxu0 0.0
        %697 = vmatpush1.msra.mxu0 0.0
        %698 = vmatprep.subr.mxu0 0.0
        %699 = vmatpush1.msra.mxu0 0.0
        %700 = vmatprep.subr.mxu0 0.0
        %701 = vmatpush1.msra.mxu0 0.0
        %702 = vmatprep.subr.mxu0 0.0
        %703 = vmatpush1.msra.mxu0 0.0
        %704 = vmatprep.subr.mxu0 0.0
        %705 = vmatpush1.msra.mxu0 0.0
        %706 = vmatprep.subr.mxu0 0.0
        %707 = vmatpush1.msra.mxu0 0.0
        %708 = vmatprep.subr.mxu0 0.0
        %709 = vmatpush1.msra.mxu0 0.0
        %710 = vmatprep.subr.mxu0 0.0
        %711 = vmatpush1.msra.mxu0 0.0
        %712 = vmatprep.subr.mxu0 0.0
        %713 = vmatpush1.msra.mxu0 0.0
        %714 = vmatprep.subr.mxu0 0.0
        %715 = vmatpush1.msra.mxu0 0.0
        %716 = vmatprep.subr.mxu0 0.0
        %717 = vmatpush1.msra.mxu0 %v681
        %718 = vmatprep.subr.mxu0 0.0
        %719 = vmatpush2.msra.mxu0 0.0
        %720 = vmatprep.subr.mxu0 0.0
        %721 = vmatpush2.msra.mxu0 0.0
        %722 = vmatprep.subr.mxu0 0.0
        %723 = vmatpush2.msra.mxu0 0.0
        %724 = vmatprep.subr.mxu0 0.0
        %725 = vmatpush2.msra.mxu0 0.0
        %726 = vmatprep.subr.mxu0 0.0
        %727 = vmatpush2.msra.mxu0 0.0
        %728 = vmatprep.subr.mxu0 0.0
        %729 = vmatpush2.msra.mxu0 0.0
        %730 = vmatprep.subr.mxu0 0.0
        %731 = vmatpush2.msra.mxu0 0.0
        %732 = vmatprep.subr.mxu0 0.0
        %733 = vmatpush2.msra.mxu0 0.0
        %734 = vmatprep.subr.mxu0 0.0
        %735 = vmatpush2.msra.mxu0 0.0
        %736 = vmatprep.subr.mxu0 0.0
        %737 = vmatpush2.msra.mxu0 0.0
        %738 = vmatprep.subr.mxu0 0.0
        %739 = vmatpush2.msra.mxu0 0.0
        %740 = vmatprep.subr.mxu0 0.0
        %741 = vmatpush2.msra.mxu0 0.0
        %742 = vmatprep.subr.mxu0 0.0
        %743 = vmatpush2.msra.mxu0 0.0
        %744 = vmatprep.subr.mxu0 0.0
        %745 = vmatpush2.msra.mxu0 0.0
        %746 = vmatprep.subr.mxu0 0.0
        %747 = vmatpush2.msra.mxu0 0.0
        %748 = vmatprep.subr.mxu0 0.0
        %749 = vmatpush2.msra.mxu0 0.0
        %750 = vmatprep.mubr.f32.mxu0 0.0
        %751 = vmatmul.mubr.f32.gmra.mxu0 %v684
        %v752 = vpop.f32.mrf.mxu0
        %v753 = vadd.f32 0.0, %v752
        %v754 = vpop.f32.mrf.mxu0
        %755 = vdwg.mxu0
        %757 = vrot.lane.b32.xlu0 %v753, 16
        %v758 = vpop.permute.xlu0 %757
        %v760 = vsel %vm426, %v586, %v758
        %761 = vst.msk [vmem:[%s188] sm:$0xff] %vm198, %v760
        %s762 = sand.u32 %s115, 1
        %s763 = scalar_lea.sflag [#allocation3], %s762
        %s764 = sand.u32 %s115, 1
        %s765 = smul.addr %s764, 8
        %s766 = scalar_lea.vmem [#allocation2], %s765
        // Predicated region
        $region37: #{inefficient_mha_forward.1} parent=35 // pred_check
          %p767 = pneg %p125
        $region38: #{inefficient_mha_forward.1} parent=35 // pred_check_branch
          %769 = sbr.rel (%p767) target = $region40
        $region39: #{inefficient_mha_forward.1} parent=35 // pred_region
          %s771 = ssub.s32 128, 128
          %772 = vsyncadd %s763, %s771
          %s773 = smul.addr %s18, 128
          %s774 = scalar_lea.hbm %s4, %s773
          %s776 = sshll.u32 %s766, 4
          %s777 = int_to_ptr.vmem [resolvable:$true] %s776
          %779 = dma.vmem_to_hbm [thread:$0]  %s777, 128, %s774, %s763
        $region40: #{inefficient_mha_forward.1} parent=35 // pred_fallthru
          _
      $region36: #{inefficient_mha_forward.1} parent=5 // pred_fallthru
        _
      %p780 = scmp.le.s32.totalorder 2, %s13
      // Predicated region
      $region41: #{inefficient_mha_forward.1} parent=5 // pred_check
        %p781 = pneg %p780
      $region42: #{inefficient_mha_forward.1} parent=5 // pred_check_branch
        %783 = sbr.rel (%p781) target = $region44
      $region43: #{inefficient_mha_forward.1} parent=5 // pred_region
        %s784 = ssub.s32 %s13, 2
        // Predicated region
        $region45: #{inefficient_mha_forward.1} parent=43 // pred_check
          %p785 = pneg %p131
        $region46: #{inefficient_mha_forward.1} parent=43 // pred_check_branch
          %787 = sbr.rel (%p785) target = $region48
        $region47: #{inefficient_mha_forward.1} parent=43 // pred_region
          %s788 = sand.u32 %s116, 1
          %s789 = scalar_lea.sflag [#allocation3], %s788
          %s790 = sand.u32 %s116, 1
          %s791 = smul.addr %s790, 8
          %s792 = scalar_lea.vmem [#allocation2], %s791
          %793 = dma.done %s789, 128
        $region48: #{inefficient_mha_forward.1} parent=43 // pred_fallthru
          _
      $region44: #{inefficient_mha_forward.1} parent=5 // pred_fallthru
        _
    $region6: #{inefficient_mha_forward.1} parent=1 // loop_footer
      %s17 = sadd.s32 1, %s13
    $region7: #{inefficient_mha_forward.1} parent=1 // loop_footer_branch
      %12 = sbr.rel target = $region3
    $region8: #{inefficient_mha_forward.1} parent=1 // loop_exit
      _
    %794 = vsyncpa [#allocation3], 1
    %s795 = scalar_lea.sflag [#allocation3], 1
    %796 = vsyncpa %s795, 1

</llo_original>
